<compile_context>
chip_gen: v5e
topology: v5e:2x2
jax: 0.10.0
libtpu: 0.0.40
codegen_flags: <defaults>
</compile_context>

<pallas_src>
import math

import jax
import jax.numpy as jnp
from jax.experimental import pallas as pl
from jax.experimental.pallas import tpu as pltpu


# ---------------------------------------------------------------------------
# Stage 1: attention keys + softmax attention weights (row tiled, runs once).
# ---------------------------------------------------------------------------
def attention_kernel(emb_ref, watt_ref, batt_ref, keys_ref, attn_ref):
    # emb_ref : [TM, E] bf16 ; watt_ref: [E, H] bf16 ; batt_ref: [1, H] f32
    # keys_ref: [TM, H] f32  ; attn_ref: [TM, H] bf16
    keys = jnp.dot(emb_ref[...], watt_ref[...],
                   preferred_element_type=jnp.float32) + batt_ref[...]
    # values == keys: the module applies the same Linear to the same input
    # twice, so softmax(values * keys) == softmax(keys * keys).
    logits = keys * keys
    logits = logits - jnp.max(logits, axis=1, keepdims=True)
    e = jnp.exp(logits)
    attn = e / jnp.sum(e, axis=1, keepdims=True)
    keys_ref[...] = keys
    attn_ref[...] = attn.astype(jnp.bfloat16)


# ---------------------------------------------------------------------------
# Stage 2: adjacency propagation (row x column tiled) + MLP head.
# ---------------------------------------------------------------------------
def decoder_kernel(keys_ref, attn_ref, adj_ref, w1_ref, b1_ref, w2_ref, b2_ref,
                   o_ref, acc_ref):
    # keys_ref: [TM, H]  f32  (precomputed keys row block, constant along k)
    # attn_ref: [TK, H]  bf16 (precomputed attention weights, k-th column block)
    # adj_ref : [TM, TK] int8 (dense adjacency tile)
    # w1_ref  : [H, H] bf16 ; b1_ref: [1, H] f32
    # w2_ref  : [H, 1] bf16 ; b2_ref: [1]    f32 (SMEM scalar)
    # o_ref   : [1, TM] f32  (lane-dense output slab, written on last k step)
    # acc_ref : [TM, H] f32 scratch accumulator for adj @ attn
    k = pl.program_id(1)

    @pl.when(k == 0)
    def _():
        acc_ref[...] = jnp.zeros_like(acc_ref)

    # Dominant matmul: int8 adjacency streamed from HBM (half the bytes of
    # bf16), upcast to bf16 on the VPU, MXU accumulates in f32.
    adj_bf = adj_ref[...].astype(jnp.bfloat16)
    acc_ref[...] += jnp.dot(adj_bf, attn_ref[...],
                            preferred_element_type=jnp.float32)

    @pl.when(k == pl.num_programs(1) - 1)
    def _():
        keys = keys_ref[...]
        x = (keys * acc_ref[...]).astype(jnp.bfloat16)
        h = jnp.dot(x, w1_ref[...],
                    preferred_element_type=jnp.float32) + b1_ref[...]
        h = jnp.maximum(h, 0.0)
        out = jnp.dot(h.astype(jnp.bfloat16), w2_ref[...],
                      preferred_element_type=jnp.float32) + b2_ref[0]
        # Lane-dense store: transpose the tiny [TM, 1] column inside the kernel.
        o_ref[...] = jax.nn.sigmoid(out).T


# ---------------------------------------------------------------------------
# VMEM budget (generation aware).
# ---------------------------------------------------------------------------
def _vmem_capacity_bytes():
    try:
        info = pltpu.get_tpu_info()
        cap = getattr(info, "vmem_capacity_bytes", None)
        if cap:
            return int(cap)
    except Exception:
        pass
    return 64 * 2**20  # conservative default (v7x per-TC VMEM)


def _vmem_limit_bytes(tm, tk, e, h):
    need = 2 * tm * tk * 1            # int8 adjacency tile, double buffered
    need += 2 * tk * h * 2            # bf16 attn column block, double buffered
    need += 2 * tm * h * 4            # f32 keys row block, double buffered
    need += 2 * tm * 4                # output slab, double buffered
    need += 2 * ((e * h + h * h + h) * 2 + (2 * h + 1) * 4)  # weights/biases
    need += tm * h * 4                # accumulator scratch
    need += 6 * tm * h * 4            # in-kernel temporaries headroom
    cap = _vmem_capacity_bytes()
    ceiling = min(96 * 2**20, (cap * 3) // 4)   # ~96 MiB v5e/v6e, <=48 MiB v7x
    return int(min(max(4 * need, 16 * 2**20), ceiling))


# ---------------------------------------------------------------------------
# Wrapper.
# ---------------------------------------------------------------------------
def decoder_forward(embedding, adj_i8, watt_t, batt, w1_t, b1, w2_t, b2,
                    *, tm=128, tk=256):
    """embedding: [N, E] f32; adj_i8: [N, N] int8 (dense adjacency with self
    loops, edge counts). Linear weights are pre-transposed (x @ W + b).
    Returns [1, N] f32."""
    N, E = embedding.shape
    H = watt_t.shape[1]
    assert adj_i8.dtype == jnp.int8 and adj_i8.shape == (N, N)

    # Don't over-pad tiny graphs; keep tiles multiples of 128 lanes.
    np_rows = -(-N // tm) * tm
    tk = min(tk, np_rows)
    pad_to = tm * tk // math.gcd(tm, tk)
    Np = -(-N // pad_to) * pad_to
    n_pad = Np - N
    if n_pad:
        embedding = jnp.pad(embedding, ((0, n_pad), (0, 0)))
        adj_i8 = jnp.pad(adj_i8, ((0, n_pad), (0, n_pad)))

    emb_bf = embedding.astype(jnp.bfloat16)       # O(N*E) traffic, negligible
    watt_bf = watt_t.astype(jnp.bfloat16)
    w1_bf = w1_t.astype(jnp.bfloat16)
    w2_bf = w2_t.astype(jnp.bfloat16)
    batt32 = batt.astype(jnp.float32).reshape(1, H)
    b1_32 = b1.astype(jnp.float32).reshape(1, H)
    b2_32 = b2.astype(jnp.float32).reshape(1)

    # --- Stage 1: keys + softmax attention weights, computed exactly once ---
    const1 = lambda i: (0, 0)
    keys, attn = pl.pallas_call(
        attention_kernel,
        out_shape=(jax.ShapeDtypeStruct((Np, H), jnp.float32),
                   jax.ShapeDtypeStruct((Np, H), jnp.bfloat16)),
        grid_spec=pltpu.PrefetchScalarGridSpec(
            num_scalar_prefetch=0,
            grid=(Np // tm,),
            in_specs=[
                pl.BlockSpec((tm, E), lambda i: (i, 0)),     # embedding row tile
                pl.BlockSpec((E, H), const1),                # attention weight
                pl.BlockSpec((1, H), const1),                # attention bias
            ],
            out_specs=[
                pl.BlockSpec((tm, H), lambda i: (i, 0)),     # keys (f32)
                pl.BlockSpec((tm, H), lambda i: (i, 0)),     # attn (bf16)
            ],
        ),
        compiler_params=pltpu.CompilerParams(
            dimension_semantics=("parallel",)),
    )(emb_bf, watt_bf, batt32)

    # --- Stage 2: adjacency propagation + MLP head --------------------------
    const2 = lambda i, k: (0, 0)
    flops = 2 * Np * Np * H + Np * (2 * H * H + 2 * H)
    bytes_accessed = (Np * Np                   # int8 adjacency stream
                      + Np * H * (2 + 4)        # attn (bf16) + keys (f32)
                      + Np * 4                  # output
                      + (E * H + H * H + H) * 2 + (2 * H + 1) * 4)

    out = pl.pallas_call(
        decoder_kernel,
        out_shape=jax.ShapeDtypeStruct((1, Np), jnp.float32),
        grid_spec=pltpu.PrefetchScalarGridSpec(
            num_scalar_prefetch=0,
            grid=(Np // tm, Np // tk),
            in_specs=[
                pl.BlockSpec((tm, H), lambda i, k: (i, 0)),    # keys row block
                pl.BlockSpec((tk, H), lambda i, k: (k, 0)),    # attn col block
                pl.BlockSpec((tm, tk), lambda i, k: (i, k)),   # int8 adj tile
                pl.BlockSpec((H, H), const2),                  # mlp layer-1 W
                pl.BlockSpec((1, H), const2),                  # mlp layer-1 b
                pl.BlockSpec((H, 1), const2),                  # mlp layer-2 W
                pl.BlockSpec(memory_space=pltpu.MemorySpace.SMEM),  # scalar b2
            ],
            out_specs=pl.BlockSpec((1, tm), lambda i, k: (0, i)),
            scratch_shapes=[pltpu.VMEM((tm, H), jnp.float32)],
        ),
        compiler_params=pltpu.CompilerParams(
            dimension_semantics=("parallel", "arbitrary"),
            vmem_limit_bytes=_vmem_limit_bytes(tm, tk, E, H),
        ),
        cost_estimate=pl.CostEstimate(flops=flops, transcendentals=Np,
                                      bytes_accessed=bytes_accessed),
    )(keys, attn, adj_i8, w1_bf, b1_32, w2_bf, b2_32)

    return out[:, :N]                                           # [1, N]


# ---------------------------------------------------------------------------
# Helpers / references.
# ---------------------------------------------------------------------------
def build_adj_matrix_int8(edge_index, num_nodes):
    """Dense int8 adjacency with self loops, mimicking
    to_dense_adj(add_self_loops(edge_index)) — built directly in the narrow
    dtype so no wrapper-side N^2 cast pass is needed."""
    src, dst = edge_index
    loops = jnp.arange(num_nodes, dtype=src.dtype)
    src = jnp.concatenate([src, loops])
    dst = jnp.concatenate([dst, loops])
    adj = jnp.zeros((num_nodes, num_nodes), jnp.int8)
    adj = adj.at[src, dst].add(jnp.ones_like(src, dtype=jnp.int8))
    return adj


def reference_bf16(embedding, adj_i8, watt_t, batt, w1_t, b1, w2_t, b2):
    """Pure-JAX reference with the same bf16-operand / f32-accumulate recipe."""
    emb_bf = embedding.astype(jnp.bfloat16)
    adj_bf = adj_i8.astype(jnp.bfloat16)
    watt_bf = watt_t.astype(jnp.bfloat16)
    w1_bf = w1_t.astype(jnp.bfloat16)
    w2_bf = w2_t.astype(jnp.bfloat16)
    keys = jnp.dot(emb_bf, watt_bf, preferred_element_type=jnp.float32) + batt
    w = jax.nn.softmax(keys * keys, axis=1)
    w = jnp.dot(adj_bf, w.astype(jnp.bfloat16), preferred_element_type=jnp.float32)
    x = (keys * w).astype(jnp.bfloat16)
    h = jnp.maximum(jnp.dot(x, w1_bf, preferred_element_type=jnp.float32) + b1, 0.0)
    out = jnp.dot(h.astype(jnp.bfloat16), w2_bf,
                  preferred_element_type=jnp.float32) + b2
    return jax.nn.sigmoid(out).T


def reference_f32(embedding, adj_i8, watt_t, batt, w1_t, b1, w2_t, b2):
    """Full-precision reference of the original module math."""
    adj = adj_i8.astype(jnp.float32)
    keys = embedding @ watt_t + batt
    w = jax.nn.softmax(keys * keys, axis=1)
    w = adj @ w
    h = jnp.maximum((keys * w) @ w1_t + b1, 0.0)
    return jax.nn.sigmoid(h @ w2_t + b2).T


if __name__ == "__main__":
    N = 512           # number of nodes (exercises 4 row tiles x 2 column tiles)
    E = 32            # embedding_dim
    H = 32            # hidden_dim

    key = jax.random.PRNGKey(0)
    k_emb, k_wa, k_ba, k_w1, k_b1, k_w2, k_b2 = jax.random.split(key, 7)

    # node embeddings
    embedding = jax.random.normal(k_emb, (N, E), jnp.float32)

    # deterministic parameter init (Linear weights stored pre-transposed)
    watt_t = jax.random.normal(k_wa, (E, H), jnp.float32) * (1.0 / E ** 0.5)
    batt = jax.random.normal(k_ba, (1, H), jnp.float32) * 0.01
    w1_t = jax.random.normal(k_w1, (H, H), jnp.float32) * (1.0 / H ** 0.5)
    b1 = jax.random.normal(k_b1, (1, H), jnp.float32) * 0.01
    w2_t = jax.random.normal(k_w2, (H, 1), jnp.float32) * (1.0 / H ** 0.5)
    b2 = jax.random.normal(k_b2, (1, 1), jnp.float32) * 0.01

    # synthetic next_snapshot.edge_index: a ring graph over N nodes
    src = jnp.arange(N, dtype=jnp.int32)
    dst = (src + 1) % N
    edge_index = jnp.stack([src, dst])
    adj_i8 = build_adj_matrix_int8(edge_index, N)

    out = decoder_forward(embedding, adj_i8, watt_t, batt, w1_t, b1, w2_t, b2)
    out = jax.block_until_ready(out)
    assert out.shape == (1, N)

    # tight check against a precision-matched reference
    ref_bf = reference_bf16(embedding, adj_i8, watt_t, batt, w1_t, b1, w2_t, b2)
    assert jnp.allclose(out, ref_bf, atol=5e-4, rtol=5e-4)

    # loose sanity check against the full-f32 original-module math
    ref32 = reference_f32(embedding, adj_i8, watt_t, batt, w1_t, b1, w2_t, b2)
    assert jnp.allclose(out, ref32, atol=2e-2, rtol=2e-2)

    print("KERNEL_OK")
</pallas_src>

<mosaic_0001>
module attributes {stable_mosaic.version = 11 : i64} {
  func.func @attention_kernel(%arg0: i32, %arg1: memref<128x32xbf16, #tpu.memory_space<vmem>>, %arg2: memref<32x32xbf16, #tpu.memory_space<vmem>>, %arg3: memref<1x32xf32, #tpu.memory_space<vmem>>, %arg4: memref<128x32xf32, #tpu.memory_space<vmem>>, %arg5: memref<128x32xbf16, #tpu.memory_space<vmem>>) attributes {dimension_semantics = [#tpu.dimension_semantics<parallel>], iteration_bounds = array<i64: 4>, scalar_prefetch = 0 : i64, scratch_operands = 0 : i64, tpu.core_type = #tpu.core_type<tc>, window_params = [{transform_indices = @transform_0, window_bounds = array<i64: 128, 32>}, {pipeline_mode = #tpu.pipeline_mode<synchronous>, transform_indices = @transform_1, window_bounds = array<i64: 32, 32>}, {pipeline_mode = #tpu.pipeline_mode<synchronous>, transform_indices = @transform_2, window_bounds = array<i64: 1, 32>}, {transform_indices = @transform_3, window_bounds = array<i64: 128, 32>}, {transform_indices = @transform_4, window_bounds = array<i64: 128, 32>}]} {
    %c0 = arith.constant 0 : index
    %c0_0 = arith.constant 0 : index
    %0 = vector.load %arg1[%c0, %c0_0] : memref<128x32xbf16, #tpu.memory_space<vmem>>, vector<128x32xbf16>
    %c0_1 = arith.constant 0 : index
    %c0_2 = arith.constant 0 : index
    %1 = vector.load %arg2[%c0_1, %c0_2] : memref<32x32xbf16, #tpu.memory_space<vmem>>, vector<32x32xbf16>
    %cst = arith.constant dense<0.000000e+00> : vector<128x32xf32>
    %2 = tpu.matmul %0, %1, %cst {dimension_numbers = #tpu.dot_dimension_numbers<[1], [0], [0], [1], [0, 0, 1, 1], [], []>} : vector<128x32xbf16>, vector<32x32xbf16>, vector<128x32xf32> -> vector<128x32xf32>
    %c0_3 = arith.constant 0 : index
    %c0_4 = arith.constant 0 : index
    %3 = vector.load %arg3[%c0_3, %c0_4] : memref<1x32xf32, #tpu.memory_space<vmem>>, vector<1x32xf32>
    %4 = vector.broadcast %3 : vector<1x32xf32> to vector<128x32xf32>
    %5 = arith.addf %2, %4 : vector<128x32xf32>
    %6 = arith.mulf %5, %5 : vector<128x32xf32>
    %cst_5 = arith.constant dense<0xFF800000> : vector<128xf32>
    %7 = vector.multi_reduction <maximumf>, %6, %cst_5 [1] : vector<128x32xf32> to vector<128xf32>
    %8 = vector.shape_cast %7 : vector<128xf32> to vector<128x1xf32>
    %9 = vector.broadcast %8 : vector<128x1xf32> to vector<128x32xf32>
    %10 = arith.subf %6, %9 : vector<128x32xf32>
    %11 = math.exp %10 : vector<128x32xf32>
    %cst_6 = arith.constant dense<0.000000e+00> : vector<128xf32>
    %12 = vector.multi_reduction <add>, %11, %cst_6 [1] : vector<128x32xf32> to vector<128xf32>
    %13 = vector.shape_cast %12 : vector<128xf32> to vector<128x1xf32>
    %14 = vector.broadcast %13 : vector<128x1xf32> to vector<128x32xf32>
    %15 = arith.divf %11, %14 : vector<128x32xf32>
    %c0_7 = arith.constant 0 : index
    %c0_8 = arith.constant 0 : index
    %16 = vector.load %arg4[%c0_7, %c0_8] : memref<128x32xf32, #tpu.memory_space<vmem>>, vector<128x32xf32>
    tpu.vector_store %arg4[%c0_7, %c0_8], %5 {strides = array<i32>} : memref<128x32xf32, #tpu.memory_space<vmem>>, vector<128x32xf32>,
    %17 = arith.truncf %15 : vector<128x32xf32> to vector<128x32xbf16>
    %c0_9 = arith.constant 0 : index
    %c0_10 = arith.constant 0 : index
    %18 = vector.load %arg5[%c0_9, %c0_10] : memref<128x32xbf16, #tpu.memory_space<vmem>>, vector<128x32xbf16>
    tpu.vector_store %arg5[%c0_9, %c0_10], %17 {strides = array<i32>} : memref<128x32xbf16, #tpu.memory_space<vmem>>, vector<128x32xbf16>,
    return
  }
  func.func @transform_0(%arg0: i32) -> (i32, i32) {
    %c0_i32 = arith.constant 0 : i32
    %c0_i32_0 = arith.constant 0 : i32
    return %arg0, %c0_i32 : i32, i32
  }
  func.func @transform_1(%arg0: i32) -> (i32, i32) {
    %c0_i32 = arith.constant 0 : i32
    %c0_i32_0 = arith.constant 0 : i32
    %c0_i32_1 = arith.constant 0 : i32
    return %c0_i32, %c0_i32_0 : i32, i32
  }
  func.func @transform_2(%arg0: i32) -> (i32, i32) {
    %c0_i32 = arith.constant 0 : i32
    %c0_i32_0 = arith.constant 0 : i32
    %c0_i32_1 = arith.constant 0 : i32
    return %c0_i32, %c0_i32_0 : i32, i32
  }
  func.func @transform_3(%arg0: i32) -> (i32, i32) {
    %c0_i32 = arith.constant 0 : i32
    %c0_i32_0 = arith.constant 0 : i32
    return %arg0, %c0_i32 : i32, i32
  }
  func.func @transform_4(%arg0: i32) -> (i32, i32) {
    %c0_i32 = arith.constant 0 : i32
    %c0_i32_0 = arith.constant 0 : i32
    return %arg0, %c0_i32 : i32, i32
  }
}

</mosaic_0001>

<llo_original>
// kernel: tpu_custom_call.1
$region0: #{tpu_custom_call.1}
  #allocation0 [shape = 'u32[]', space=smem, size = 0x4, offset = 0x4, fixed_abs, tag = 'smem constant byte address 0x4 - core index']
  #allocation1 [shape = 'u32[72,128]{1,0:T(1,128)}', space=vmem, size = 0x9000, scoped, tag = 'internal scratch']
  %s0 = inlined_call_operand.vmem [shape: bf16[512,32], index: 0, kind: input, shape index: {}]
  %s1 = inlined_call_operand.vmem [shape: bf16[32,32], index: 1, kind: input, shape index: {}]
  %s2 = inlined_call_operand.vmem [shape: f32[1,32], index: 2, kind: input, shape index: {}]
  %s3 = inlined_call_operand.vmem [shape: f32[512,32], index: 3, kind: output, shape index: {0}]
  %s4 = inlined_call_operand.vmem [shape: bf16[512,32], index: 4, kind: output, shape index: {1}]
  %5 = xla_tuple %s3, %s4
  %s6 = sld [smem:[#allocation0]]
  $region53: #{tpu_custom_call.1} parent=0
    _
  %s8 = ssub.s32 1, %s6
  %s9 = scalar_select 0, %s8, %s6
  loop: start=0, step=1, limit=6
  $region2: #{tpu_custom_call.1} parent=0 // loop_pre_header
    _
  $region3: #{tpu_custom_call.1} parent=0 // loop_header
    %s11 = sphi 0, %s15
    %p12 = scmp.ge.s32.totalorder %s11, 6
    %s21 = sphi 0, %s23
    %s24 = sphi 0, %s21
    %s25 = sphi 0, %s24
    %s41 = sphi 0, %s25
    %s45 = sphi 0, %s45
    %s47 = sphi 0, %s45
    %s48 = sphi 0, %s47
    %s62 = sphi 0, %s48
    %s66 = sphi 0, %s66
    %s68 = sphi 0, %s66
    %s69 = sphi 0, %s68
    %s83 = sphi 0, %s69
    %s89 = sphi 0, %s91
    %s92 = sphi 0, %s89
    %s93 = sphi 0, %s92
    %s109 = sphi 0, %s93
    %s115 = sphi 0, %s117
    %s118 = sphi 0, %s115
    %s119 = sphi 0, %s118
    %s135 = sphi 0, %s119
  $region4: #{tpu_custom_call.1} parent=0 // loop_header_branch
    %14 = sbr.rel (%p12) target = $region8
  $region5: #{tpu_custom_call.1} parent=0 // loop_body
    %s16 = ssub.s32 %s11, 1
    %s17 = ssub.s32 %s11, 2
    %s18 = sadd.s32 %s11, 1
    %s19 = ssub.s32 %s11, %s18
    %p20 = scmp.eq.s32.totalorder %s19, 0
    %s22 = sadd.s32 %s21, 1
    %s23 = scalar_select %p20, %s21, %s22
    %p26 = pneg %p20
    %p27 = scmp.eq.s32.totalorder %s11, 3
    %p28 = por %p26, %p27
    %p29 = scmp.ne.s32.totalorder %s21, %s24
    %p30 = scmp.eq.s32.totalorder %s11, 0
    %p31 = por %p29, %p30
    %p32 = scmp.ne.s32.totalorder %s21, %s24
    %p33 = scmp.eq.s32.totalorder %s16, 3
    %p34 = por %p32, %p33
    %p35 = scmp.ne.s32.totalorder %s24, %s25
    %p36 = scmp.eq.s32.totalorder %s16, 0
    %p37 = por %p35, %p36
    %p38 = scmp.ne.s32.totalorder %s24, %s25
    %p39 = scmp.eq.s32.totalorder %s17, 3
    %p40 = por %p38, %p39
    %p42 = scmp.ne.s32.totalorder %s25, %s41
    %p43 = scmp.eq.s32.totalorder %s17, 0
    %p44 = por %p42, %p43
    %s46 = sadd.s32 %s45, 1
    %p49 = scmp.eq.s32.totalorder %s11, 3
    %p50 = scmp.ne.s32.totalorder %s45, %s47
    %p51 = scmp.eq.s32.totalorder %s11, 0
    %p52 = por %p50, %p51
    %p53 = scmp.ne.s32.totalorder %s45, %s47
    %p54 = scmp.eq.s32.totalorder %s16, 3
    %p55 = por %p53, %p54
    %p56 = scmp.ne.s32.totalorder %s47, %s48
    %p57 = scmp.eq.s32.totalorder %s16, 0
    %p58 = por %p56, %p57
    %p59 = scmp.ne.s32.totalorder %s47, %s48
    %p60 = scmp.eq.s32.totalorder %s17, 3
    %p61 = por %p59, %p60
    %p63 = scmp.ne.s32.totalorder %s48, %s62
    %p64 = scmp.eq.s32.totalorder %s17, 0
    %p65 = por %p63, %p64
    %s67 = sadd.s32 %s66, 1
    %p70 = scmp.eq.s32.totalorder %s11, 3
    %p71 = scmp.ne.s32.totalorder %s66, %s68
    %p72 = scmp.eq.s32.totalorder %s11, 0
    %p73 = por %p71, %p72
    %p74 = scmp.ne.s32.totalorder %s66, %s68
    %p75 = scmp.eq.s32.totalorder %s16, 3
    %p76 = por %p74, %p75
    %p77 = scmp.ne.s32.totalorder %s68, %s69
    %p78 = scmp.eq.s32.totalorder %s16, 0
    %p79 = por %p77, %p78
    %p80 = scmp.ne.s32.totalorder %s68, %s69
    %p81 = scmp.eq.s32.totalorder %s17, 3
    %p82 = por %p80, %p81
    %p84 = scmp.ne.s32.totalorder %s69, %s83
    %p85 = scmp.eq.s32.totalorder %s17, 0
    %p86 = por %p84, %p85
    %s87 = ssub.s32 %s11, %s18
    %p88 = scmp.eq.s32.totalorder %s87, 0
    %s90 = sadd.s32 %s89, 1
    %s91 = scalar_select %p88, %s89, %s90
    %p94 = pneg %p88
    %p95 = scmp.eq.s32.totalorder %s11, 3
    %p96 = por %p94, %p95
    %p97 = scmp.ne.s32.totalorder %s89, %s92
    %p98 = scmp.eq.s32.totalorder %s11, 0
    %p99 = por %p97, %p98
    %p100 = scmp.ne.s32.totalorder %s89, %s92
    %p101 = scmp.eq.s32.totalorder %s16, 3
    %p102 = por %p100, %p101
    %p103 = scmp.ne.s32.totalorder %s92, %s93
    %p104 = scmp.eq.s32.totalorder %s16, 0
    %p105 = por %p103, %p104
    %p106 = scmp.ne.s32.totalorder %s92, %s93
    %p107 = scmp.eq.s32.totalorder %s17, 3
    %p108 = por %p106, %p107
    %p110 = scmp.ne.s32.totalorder %s93, %s109
    %p111 = scmp.eq.s32.totalorder %s17, 0
    %p112 = por %p110, %p111
    %s113 = ssub.s32 %s11, %s18
    %p114 = scmp.eq.s32.totalorder %s113, 0
    %s116 = sadd.s32 %s115, 1
    %s117 = scalar_select %p114, %s115, %s116
    %p120 = pneg %p114
    %p121 = scmp.eq.s32.totalorder %s11, 3
    %p122 = por %p120, %p121
    %p123 = scmp.ne.s32.totalorder %s115, %s118
    %p124 = scmp.eq.s32.totalorder %s11, 0
    %p125 = por %p123, %p124
    %p126 = scmp.ne.s32.totalorder %s115, %s118
    %p127 = scmp.eq.s32.totalorder %s16, 3
    %p128 = por %p126, %p127
    %p129 = scmp.ne.s32.totalorder %s118, %s119
    %p130 = scmp.eq.s32.totalorder %s16, 0
    %p131 = por %p129, %p130
    %p132 = scmp.ne.s32.totalorder %s118, %s119
    %p133 = scmp.eq.s32.totalorder %s17, 3
    %p134 = por %p132, %p133
    %p136 = scmp.ne.s32.totalorder %s119, %s135
    %p137 = scmp.eq.s32.totalorder %s17, 0
    %p138 = por %p136, %p137
    %p139 = scmp.le.s32.totalorder 1, %s11
    %p140 = scmp.lt.s32.totalorder %s11, 5
    %p141 = pnand %p139, %p140
    %p142 = pneg %p141
    // Predicated region
    $region9: #{tpu_custom_call.1} parent=5 // pred_check
      _
    $region10: #{tpu_custom_call.1} parent=5 // pred_check_branch
      %144 = sbr.rel (%p141) target = $region12
    $region11: #{tpu_custom_call.1} parent=5 // pred_region
      %s145 = ssub.s32 %s11, 1
      // Predicated region
      $region13: #{tpu_custom_call.1} parent=11 // pred_check
        %p146 = pneg %p58
      $region14: #{tpu_custom_call.1} parent=11 // pred_check_branch
        %148 = sbr.rel (%p146) target = $region16
      $region15: #{tpu_custom_call.1} parent=11 // pred_region
        _
      $region16: #{tpu_custom_call.1} parent=11 // pred_fallthru
        _
      // Predicated region
      $region17: #{tpu_custom_call.1} parent=11 // pred_check
        %p149 = pneg %p79
      $region18: #{tpu_custom_call.1} parent=11 // pred_check_branch
        %151 = sbr.rel (%p149) target = $region20
      $region19: #{tpu_custom_call.1} parent=11 // pred_region
        _
      $region20: #{tpu_custom_call.1} parent=11 // pred_fallthru
        _
    $region12: #{tpu_custom_call.1} parent=5 // pred_fallthru
      _
    %p152 = scmp.lt.s32.totalorder %s11, 4
    // Predicated region
    $region21: #{tpu_custom_call.1} parent=5 // pred_check
      %p153 = pneg %p152
    $region22: #{tpu_custom_call.1} parent=5 // pred_check_branch
      %155 = sbr.rel (%p153) target = $region24
    $region23: #{tpu_custom_call.1} parent=5 // pred_region
      // Predicated region
      $region25: #{tpu_custom_call.1} parent=23 // pred_check
        %p156 = pneg %p31
      $region26: #{tpu_custom_call.1} parent=23 // pred_check_branch
        %158 = sbr.rel (%p156) target = $region28
      $region27: #{tpu_custom_call.1} parent=23 // pred_region
        %s159 = smul.u32 16, %s11
        %p160 = scmp.lt.s32.totalorder %s159, 63
        %s161 = scalar_select %p160, %s159, 63
        %s162 = smul.addr %s161, 4
        %s163 = scalar_lea.vmem %s0, %s162
        %s164 = smul.u32 16, %s11
      $region28: #{tpu_custom_call.1} parent=23 // pred_fallthru
        _
    $region24: #{tpu_custom_call.1} parent=5 // pred_fallthru
      _
    %p165 = scmp.le.s32.totalorder 1, %s11
    %p166 = scmp.lt.s32.totalorder %s11, 5
    %p167 = pnand %p165, %p166
    %p168 = pneg %p167
    // Predicated region
    $region29: #{tpu_custom_call.1} parent=5 // pred_check
      _
    $region30: #{tpu_custom_call.1} parent=5 // pred_check_branch
      %170 = sbr.rel (%p167) target = $region32
    $region31: #{tpu_custom_call.1} parent=5 // pred_region
      %s171 = ssub.s32 %s11, 1
      %s172 = smul.u32 16, %s16
      %p173 = scmp.lt.s32.totalorder %s172, 63
      %s174 = scalar_select %p173, %s172, 63
      %s175 = smul.addr %s174, 4
      %s176 = scalar_lea.vmem %s0, %s175
      %p177 = pneg %p37
      %p178 = pneg %p34
      %p179 = pneg %p58
      %p180 = pneg %p55
      %p181 = pneg %p79
      %p182 = pneg %p76
      %p183 = pneg %p105
      %p184 = pneg %p102
      %s185 = smul.u32 16, %s16
      %p186 = scmp.lt.s32.totalorder %s185, 63
      %s187 = scalar_select %p186, %s185, 63
      %s188 = smul.addr %s187, 8
      %s189 = scalar_lea.vmem %s3, %s188
      %p190 = pneg %p131
      %p191 = pneg %p128
      %s192 = smul.u32 16, %s16
      %p193 = scmp.lt.s32.totalorder %s192, 63
      %s194 = scalar_select %p193, %s192, 63
      %s195 = smul.addr %s194, 4
      %s196 = scalar_lea.vmem %s4, %s195
      %s197 = smul.u32 16, %s16
      %p198 = scmp.lt.s32.totalorder %s197, 63
      %s199 = scalar_select %p198, %s197, 63
      %s200 = smul.addr %s199, 4
      %s201 = scalar_lea.vmem %s0, %s200
      %s202 = smul.u32 16, %s16
      %s203 = smul.u32 16, %s16
      %p204 = scmp.lt.s32.totalorder %s203, 63
      %s205 = scalar_select %p204, %s203, 63
      %s206 = smul.addr %s205, 8
      %s207 = scalar_lea.vmem %s3, %s206
      %s208 = smul.u32 16, %s16
      %s209 = smul.u32 16, %s16
      %p210 = scmp.lt.s32.totalorder %s209, 63
      %s211 = scalar_select %p210, %s209, 63
      %s212 = smul.addr %s211, 4
      %s213 = scalar_lea.vmem %s4, %s212
      %s214 = smul.u32 16, %s16
      %v216 = vld [vmem:[%s201] sm:$0xf]
      %v217 = vld [vmem:[%s201 + $0x4] sm:$0xf]
      %v218 = vld [vmem:[%s201 + $0x8] sm:$0xf]
      %v219 = vld [vmem:[%s201 + $0xc] sm:$0xf]
      %v220 = vld [vmem:[%s201 + $0x10] sm:$0xf]
      %v221 = vld [vmem:[%s201 + $0x14] sm:$0xf]
      %v222 = vld [vmem:[%s201 + $0x18] sm:$0xf]
      %v223 = vld [vmem:[%s201 + $0x1c] sm:$0xf]
      %v224 = vld [vmem:[%s201 + $0x20] sm:$0xf]
      %v225 = vld [vmem:[%s201 + $0x24] sm:$0xf]
      %v226 = vld [vmem:[%s201 + $0x28] sm:$0xf]
      %v227 = vld [vmem:[%s201 + $0x2c] sm:$0xf]
      %v228 = vld [vmem:[%s201 + $0x30] sm:$0xf]
      %v229 = vld [vmem:[%s201 + $0x34] sm:$0xf]
      %v230 = vld [vmem:[%s201 + $0x38] sm:$0xf]
      %v231 = vld [vmem:[%s201 + $0x3c] sm:$0xf]
      %v232 = vld [vmem:[%s1] sm:$0xf]
      %v233 = vld [vmem:[%s1 + $0x4] sm:$0xf]
      %v234 = vld [vmem:[%s1 + $0x8] sm:$0xf]
      %v235 = vld [vmem:[%s1 + $0xc] sm:$0xf]
      %v236 = vld [vmem:[%s2] sm:$0x1]
      %v238 = vperm.slane %v236, 0
      %v256 = vunpack.c.l.b16 %v216
      %v257 = vunpack.c.l.b16 %v217
      %v258 = vunpack.c.l.b16 %v218
      %v259 = vunpack.c.l.b16 %v219
      %v260 = vunpack.c.l.b16 %v220
      %v261 = vunpack.c.l.b16 %v221
      %v262 = vunpack.c.l.b16 %v222
      %v263 = vunpack.c.l.b16 %v223
      %v264 = vunpack.c.l.b16 %v224
      %v265 = vunpack.c.l.b16 %v225
      %v266 = vunpack.c.l.b16 %v226
      %v267 = vunpack.c.l.b16 %v227
      %v268 = vunpack.c.l.b16 %v228
      %v269 = vunpack.c.l.b16 %v229
      %v270 = vunpack.c.l.b16 %v230
      %v271 = vunpack.c.l.b16 %v231
      %v272 = vpack.c.b16 %v257, %v256
      %v273 = vpack.c.b16 %v259, %v258
      %v274 = vpack.c.b16 %v261, %v260
      %v275 = vpack.c.b16 %v263, %v262
      %v276 = vpack.c.b16 %v265, %v264
      %v277 = vpack.c.b16 %v267, %v266
      %v278 = vpack.c.b16 %v269, %v268
      %v279 = vpack.c.b16 %v271, %v270
      %v284 = vunpack.c.l.b16 %v232
      %v285 = vunpack.c.l.b16 %v233
      %v286 = vunpack.c.l.b16 %v234
      %v287 = vunpack.c.l.b16 %v235
      %v288 = vpack.c.b16 %v285, %v284
      %v289 = vpack.c.b16 %v287, %v286
      %vm292 = vcmask 261120
      %v294 = vsel %vm292, %v272, 0
      %v297 = vsel %vm292, %v273, 0
      %v300 = vsel %vm292, %v274, 0
      %v303 = vsel %vm292, %v275, 0
      %v306 = vsel %vm292, %v276, 0
      %v309 = vsel %vm292, %v277, 0
      %v312 = vsel %vm292, %v278, 0
      %v315 = vsel %vm292, %v279, 0
      %317 = vmatpush.bf16.msra.mxu0 0
      %318 = vmatpush.bf16.msra.mxu0 0
      %319 = vmatpush.bf16.msra.mxu0 0
      %320 = vmatpush.bf16.msra.mxu0 0
      %321 = vmatpush.bf16.msra.mxu0 0
      %322 = vmatpush.bf16.msra.mxu0 0
      %323 = vmatpush.bf16.msra.mxu0 %v289
      %324 = vmatpush.bf16.msra.mxu0 %v288
      %325 = vmatmul.bf16.gmra.mxu0 %v294
      %v326 = vpop.f32.mrf.mxu0
      %v327 = vadd.f32 %v238, %v326
      %v328 = vpop.f32.mrf.mxu0
      %v329 = vadd.f32 %v238, %v328
      %330 = vmatmul.bf16.gmra.mxu0 %v297
      %v331 = vpop.f32.mrf.mxu0
      %v332 = vadd.f32 %v238, %v331
      %v333 = vpop.f32.mrf.mxu0
      %v334 = vadd.f32 %v238, %v333
      %335 = vmatmul.bf16.gmra.mxu0 %v300
      %v336 = vpop.f32.mrf.mxu0
      %v337 = vadd.f32 %v238, %v336
      %v338 = vpop.f32.mrf.mxu0
      %v339 = vadd.f32 %v238, %v338
      %340 = vmatmul.bf16.gmra.mxu0 %v303
      %v341 = vpop.f32.mrf.mxu0
      %v342 = vadd.f32 %v238, %v341
      %v343 = vpop.f32.mrf.mxu0
      %v344 = vadd.f32 %v238, %v343
      %345 = vmatmul.bf16.gmra.mxu0 %v306
      %v346 = vpop.f32.mrf.mxu0
      %v347 = vadd.f32 %v238, %v346
      %v348 = vpop.f32.mrf.mxu0
      %v349 = vadd.f32 %v238, %v348
      %350 = vmatmul.bf16.gmra.mxu0 %v309
      %v351 = vpop.f32.mrf.mxu0
      %v352 = vadd.f32 %v238, %v351
      %v353 = vpop.f32.mrf.mxu0
      %v354 = vadd.f32 %v238, %v353
      %355 = vmatmul.bf16.gmra.mxu0 %v312
      %v356 = vpop.f32.mrf.mxu0
      %v357 = vadd.f32 %v238, %v356
      %v358 = vpop.f32.mrf.mxu0
      %v359 = vadd.f32 %v238, %v358
      %360 = vmatmul.bf16.gmra.mxu0 %v315
      %v361 = vpop.f32.mrf.mxu0
      %v362 = vadd.f32 %v238, %v361
      %v363 = vpop.f32.mrf.mxu0
      %v364 = vadd.f32 %v238, %v363
      %365 = vdwg.mxu0
      %v366 = vmul.f32 %v327, %v327
      %v367 = vmul.f32 %v329, %v329
      %v368 = vmul.f32 %v332, %v332
      %v369 = vmul.f32 %v334, %v334
      %v370 = vmul.f32 %v337, %v337
      %v371 = vmul.f32 %v339, %v339
      %v372 = vmul.f32 %v342, %v342
      %v373 = vmul.f32 %v344, %v344
      %v374 = vmul.f32 %v347, %v347
      %v375 = vmul.f32 %v349, %v349
      %v376 = vmul.f32 %v352, %v352
      %v377 = vmul.f32 %v354, %v354
      %v378 = vmul.f32 %v357, %v357
      %v379 = vmul.f32 %v359, %v359
      %v380 = vmul.f32 %v362, %v362
      %v381 = vmul.f32 %v364, %v364
      %v382 = vsel %vm292, %v366, -inf
      %383 = vmax.xlane.f32.xlu0 %v382
      %v384 = vpop.xlane.xlu0 %383
      %v385 = vsel %vm292, %v367, -inf
      %386 = vmax.xlane.f32.xlu0 %v385
      %v387 = vpop.xlane.xlu0 %386
      %v388 = vsel %vm292, %v368, -inf
      %389 = vmax.xlane.f32.xlu0 %v388
      %v390 = vpop.xlane.xlu0 %389
      %v391 = vsel %vm292, %v369, -inf
      %392 = vmax.xlane.f32.xlu0 %v391
      %v393 = vpop.xlane.xlu0 %392
      %v394 = vsel %vm292, %v370, -inf
      %395 = vmax.xlane.f32.xlu0 %v394
      %v396 = vpop.xlane.xlu0 %395
      %v397 = vsel %vm292, %v371, -inf
      %398 = vmax.xlane.f32.xlu0 %v397
      %v399 = vpop.xlane.xlu0 %398
      %v400 = vsel %vm292, %v372, -inf
      %401 = vmax.xlane.f32.xlu0 %v400
      %v402 = vpop.xlane.xlu0 %401
      %v403 = vsel %vm292, %v373, -inf
      %404 = vmax.xlane.f32.xlu0 %v403
      %v405 = vpop.xlane.xlu0 %404
      %v406 = vsel %vm292, %v374, -inf
      %407 = vmax.xlane.f32.xlu0 %v406
      %v408 = vpop.xlane.xlu0 %407
      %v409 = vsel %vm292, %v375, -inf
      %410 = vmax.xlane.f32.xlu0 %v409
      %v411 = vpop.xlane.xlu0 %410
      %v412 = vsel %vm292, %v376, -inf
      %413 = vmax.xlane.f32.xlu0 %v412
      %v414 = vpop.xlane.xlu0 %413
      %v415 = vsel %vm292, %v377, -inf
      %416 = vmax.xlane.f32.xlu0 %v415
      %v417 = vpop.xlane.xlu0 %416
      %v418 = vsel %vm292, %v378, -inf
      %419 = vmax.xlane.f32.xlu0 %v418
      %v420 = vpop.xlane.xlu0 %419
      %v421 = vsel %vm292, %v379, -inf
      %422 = vmax.xlane.f32.xlu0 %v421
      %v423 = vpop.xlane.xlu0 %422
      %v424 = vsel %vm292, %v380, -inf
      %425 = vmax.xlane.f32.xlu0 %v424
      %v426 = vpop.xlane.xlu0 %425
      %v427 = vsel %vm292, %v381, -inf
      %428 = vmax.xlane.f32.xlu0 %v427
      %v429 = vpop.xlane.xlu0 %428
      %v430 = vsub.f32 %v366, %v384
      %v431 = vsub.f32 %v367, %v387
      %v432 = vsub.f32 %v368, %v390
      %v433 = vsub.f32 %v369, %v393
      %v434 = vsub.f32 %v370, %v396
      %v435 = vsub.f32 %v371, %v399
      %v436 = vsub.f32 %v372, %v402
      %v437 = vsub.f32 %v373, %v405
      %v438 = vsub.f32 %v374, %v408
      %v439 = vsub.f32 %v375, %v411
      %v440 = vsub.f32 %v376, %v414
      %v441 = vsub.f32 %v377, %v417
      %v442 = vsub.f32 %v378, %v420
      %v443 = vsub.f32 %v379, %v423
      %v444 = vsub.f32 %v380, %v426
      %v445 = vsub.f32 %v381, %v429
      %v446 = vmul.f32 %v430, 1.442695
      %v447 = vpow.pop %v446
      %v448 = vmul.f32 %v431, 1.442695
      %v449 = vpow.pop %v448
      %v450 = vmul.f32 %v432, 1.442695
      %v451 = vpow.pop %v450
      %v452 = vmul.f32 %v433, 1.442695
      %v453 = vpow.pop %v452
      %v454 = vmul.f32 %v434, 1.442695
      %v455 = vpow.pop %v454
      %v456 = vmul.f32 %v435, 1.442695
      %v457 = vpow.pop %v456
      %v458 = vmul.f32 %v436, 1.442695
      %v459 = vpow.pop %v458
      %v460 = vmul.f32 %v437, 1.442695
      %v461 = vpow.pop %v460
      %v462 = vmul.f32 %v438, 1.442695
      %v463 = vpow.pop %v462
      %v464 = vmul.f32 %v439, 1.442695
      %v465 = vpow.pop %v464
      %v466 = vmul.f32 %v440, 1.442695
      %v467 = vpow.pop %v466
      %v468 = vmul.f32 %v441, 1.442695
      %v469 = vpow.pop %v468
      %v470 = vmul.f32 %v442, 1.442695
      %v471 = vpow.pop %v470
      %v472 = vmul.f32 %v443, 1.442695
      %v473 = vpow.pop %v472
      %v474 = vmul.f32 %v444, 1.442695
      %v475 = vpow.pop %v474
      %v476 = vmul.f32 %v445, 1.442695
      %v477 = vpow.pop %v476
      %v478 = vsel %vm292, %v447, 0.0
      %479 = vadd.xlane.f32.xlu0 %v478
      %v480 = vpop.xlane.xlu0 %479
      %v481 = vsel %vm292, %v449, 0.0
      %482 = vadd.xlane.f32.xlu0 %v481
      %v483 = vpop.xlane.xlu0 %482
      %v484 = vsel %vm292, %v451, 0.0
      %485 = vadd.xlane.f32.xlu0 %v484
      %v486 = vpop.xlane.xlu0 %485
      %v487 = vsel %vm292, %v453, 0.0
      %488 = vadd.xlane.f32.xlu0 %v487
      %v489 = vpop.xlane.xlu0 %488
      %v490 = vsel %vm292, %v455, 0.0
      %491 = vadd.xlane.f32.xlu0 %v490
      %v492 = vpop.xlane.xlu0 %491
      %v493 = vsel %vm292, %v457, 0.0
      %494 = vadd.xlane.f32.xlu0 %v493
      %v495 = vpop.xlane.xlu0 %494
      %v496 = vsel %vm292, %v459, 0.0
      %497 = vadd.xlane.f32.xlu0 %v496
      %v498 = vpop.xlane.xlu0 %497
      %v499 = vsel %vm292, %v461, 0.0
      %500 = vadd.xlane.f32.xlu0 %v499
      %v501 = vpop.xlane.xlu0 %500
      %v502 = vsel %vm292, %v463, 0.0
      %503 = vadd.xlane.f32.xlu0 %v502
      %v504 = vpop.xlane.xlu0 %503
      %v505 = vsel %vm292, %v465, 0.0
      %506 = vadd.xlane.f32.xlu0 %v505
      %v507 = vpop.xlane.xlu0 %506
      %v508 = vsel %vm292, %v467, 0.0
      %509 = vadd.xlane.f32.xlu0 %v508
      %v510 = vpop.xlane.xlu0 %509
      %v511 = vsel %vm292, %v469, 0.0
      %512 = vadd.xlane.f32.xlu0 %v511
      %v513 = vpop.xlane.xlu0 %512
      %v514 = vsel %vm292, %v471, 0.0
      %515 = vadd.xlane.f32.xlu0 %v514
      %v516 = vpop.xlane.xlu0 %515
      %v517 = vsel %vm292, %v473, 0.0
      %518 = vadd.xlane.f32.xlu0 %v517
      %v519 = vpop.xlane.xlu0 %518
      %v520 = vsel %vm292, %v475, 0.0
      %521 = vadd.xlane.f32.xlu0 %v520
      %v522 = vpop.xlane.xlu0 %521
      %v523 = vsel %vm292, %v477, 0.0
      %524 = vadd.xlane.f32.xlu0 %v523
      %v525 = vpop.xlane.xlu0 %524
      %v526 = vrcp.pop %v480
      %v527 = vmul.f32 %v480, %v526
      %v528 = vsub.f32 1.0, %v527
      %v529 = vmul.f32 %v526, %v528
      %v530 = vadd.f32 %v526, %v529
      %vm531 = vweird.f32 %v480
      %vm532 = vweird.f32 %v526
      %vm533 = vmor %vm531, %vm532
      %v534 = vsel %vm533, %v526, %v530
      %v535 = vand.u32 2147483647, %v480
      %vm536 = vcmp.eq.f32.partialorder %v535, 8.507059e+37
      %v537 = vand.u32 %v480, 2147483648
      %v538 = vor.u32 1.1754944e-38, %v537
      %v539 = vsel %vm536, %v538, %v534
      %v540 = vmul.f32 %v447, %v539
      %v541 = vrcp.pop %v483
      %v542 = vmul.f32 %v483, %v541
      %v543 = vsub.f32 1.0, %v542
      %v544 = vmul.f32 %v541, %v543
      %v545 = vadd.f32 %v541, %v544
      %vm546 = vweird.f32 %v483
      %vm547 = vweird.f32 %v541
      %vm548 = vmor %vm546, %vm547
      %v549 = vsel %vm548, %v541, %v545
      %v550 = vand.u32 2147483647, %v483
      %vm551 = vcmp.eq.f32.partialorder %v550, 8.507059e+37
      %v552 = vand.u32 %v483, 2147483648
      %v553 = vor.u32 1.1754944e-38, %v552
      %v554 = vsel %vm551, %v553, %v549
      %v555 = vmul.f32 %v449, %v554
      %v556 = vrcp.pop %v486
      %v557 = vmul.f32 %v486, %v556
      %v558 = vsub.f32 1.0, %v557
      %v559 = vmul.f32 %v556, %v558
      %v560 = vadd.f32 %v556, %v559
      %vm561 = vweird.f32 %v486
      %vm562 = vweird.f32 %v556
      %vm563 = vmor %vm561, %vm562
      %v564 = vsel %vm563, %v556, %v560
      %v565 = vand.u32 2147483647, %v486
      %vm566 = vcmp.eq.f32.partialorder %v565, 8.507059e+37
      %v567 = vand.u32 %v486, 2147483648
      %v568 = vor.u32 1.1754944e-38, %v567
      %v569 = vsel %vm566, %v568, %v564
      %v570 = vmul.f32 %v451, %v569
      %v571 = vrcp.pop %v489
      %v572 = vmul.f32 %v489, %v571
      %v573 = vsub.f32 1.0, %v572
      %v574 = vmul.f32 %v571, %v573
      %v575 = vadd.f32 %v571, %v574
      %vm576 = vweird.f32 %v489
      %vm577 = vweird.f32 %v571
      %vm578 = vmor %vm576, %vm577
      %v579 = vsel %vm578, %v571, %v575
      %v580 = vand.u32 2147483647, %v489
      %vm581 = vcmp.eq.f32.partialorder %v580, 8.507059e+37
      %v582 = vand.u32 %v489, 2147483648
      %v583 = vor.u32 1.1754944e-38, %v582
      %v584 = vsel %vm581, %v583, %v579
      %v585 = vmul.f32 %v453, %v584
      %v586 = vrcp.pop %v492
      %v587 = vmul.f32 %v492, %v586
      %v588 = vsub.f32 1.0, %v587
      %v589 = vmul.f32 %v586, %v588
      %v590 = vadd.f32 %v586, %v589
      %vm591 = vweird.f32 %v492
      %vm592 = vweird.f32 %v586
      %vm593 = vmor %vm591, %vm592
      %v594 = vsel %vm593, %v586, %v590
      %v595 = vand.u32 2147483647, %v492
      %vm596 = vcmp.eq.f32.partialorder %v595, 8.507059e+37
      %v597 = vand.u32 %v492, 2147483648
      %v598 = vor.u32 1.1754944e-38, %v597
      %v599 = vsel %vm596, %v598, %v594
      %v600 = vmul.f32 %v455, %v599
      %v601 = vrcp.pop %v495
      %v602 = vmul.f32 %v495, %v601
      %v603 = vsub.f32 1.0, %v602
      %v604 = vmul.f32 %v601, %v603
      %v605 = vadd.f32 %v601, %v604
      %vm606 = vweird.f32 %v495
      %vm607 = vweird.f32 %v601
      %vm608 = vmor %vm606, %vm607
      %v609 = vsel %vm608, %v601, %v605
      %v610 = vand.u32 2147483647, %v495
      %vm611 = vcmp.eq.f32.partialorder %v610, 8.507059e+37
      %v612 = vand.u32 %v495, 2147483648
      %v613 = vor.u32 1.1754944e-38, %v612
      %v614 = vsel %vm611, %v613, %v609
      %v615 = vmul.f32 %v457, %v614
      %v616 = vrcp.pop %v498
      %v617 = vmul.f32 %v498, %v616
      %v618 = vsub.f32 1.0, %v617
      %v619 = vmul.f32 %v616, %v618
      %v620 = vadd.f32 %v616, %v619
      %vm621 = vweird.f32 %v498
      %vm622 = vweird.f32 %v616
      %vm623 = vmor %vm621, %vm622
      %v624 = vsel %vm623, %v616, %v620
      %v625 = vand.u32 2147483647, %v498
      %vm626 = vcmp.eq.f32.partialorder %v625, 8.507059e+37
      %v627 = vand.u32 %v498, 2147483648
      %v628 = vor.u32 1.1754944e-38, %v627
      %v629 = vsel %vm626, %v628, %v624
      %v630 = vmul.f32 %v459, %v629
      %v631 = vrcp.pop %v501
      %v632 = vmul.f32 %v501, %v631
      %v633 = vsub.f32 1.0, %v632
      %v634 = vmul.f32 %v631, %v633
      %v635 = vadd.f32 %v631, %v634
      %vm636 = vweird.f32 %v501
      %vm637 = vweird.f32 %v631
      %vm638 = vmor %vm636, %vm637
      %v639 = vsel %vm638, %v631, %v635
      %v640 = vand.u32 2147483647, %v501
      %vm641 = vcmp.eq.f32.partialorder %v640, 8.507059e+37
      %v642 = vand.u32 %v501, 2147483648
      %v643 = vor.u32 1.1754944e-38, %v642
      %v644 = vsel %vm641, %v643, %v639
      %v645 = vmul.f32 %v461, %v644
      %v646 = vrcp.pop %v504
      %v647 = vmul.f32 %v504, %v646
      %v648 = vsub.f32 1.0, %v647
      %v649 = vmul.f32 %v646, %v648
      %v650 = vadd.f32 %v646, %v649
      %vm651 = vweird.f32 %v504
      %vm652 = vweird.f32 %v646
      %vm653 = vmor %vm651, %vm652
      %v654 = vsel %vm653, %v646, %v650
      %v655 = vand.u32 2147483647, %v504
      %vm656 = vcmp.eq.f32.partialorder %v655, 8.507059e+37
      %v657 = vand.u32 %v504, 2147483648
      %v658 = vor.u32 1.1754944e-38, %v657
      %v659 = vsel %vm656, %v658, %v654
      %v660 = vmul.f32 %v463, %v659
      %v661 = vrcp.pop %v507
      %v662 = vmul.f32 %v507, %v661
      %v663 = vsub.f32 1.0, %v662
      %v664 = vmul.f32 %v661, %v663
      %v665 = vadd.f32 %v661, %v664
      %vm666 = vweird.f32 %v507
      %vm667 = vweird.f32 %v661
      %vm668 = vmor %vm666, %vm667
      %v669 = vsel %vm668, %v661, %v665
      %v670 = vand.u32 2147483647, %v507
      %vm671 = vcmp.eq.f32.partialorder %v670, 8.507059e+37
      %v672 = vand.u32 %v507, 2147483648
      %v673 = vor.u32 1.1754944e-38, %v672
      %v674 = vsel %vm671, %v673, %v669
      %v675 = vmul.f32 %v465, %v674
      %v676 = vrcp.pop %v510
      %v677 = vmul.f32 %v510, %v676
      %v678 = vsub.f32 1.0, %v677
      %v679 = vmul.f32 %v676, %v678
      %v680 = vadd.f32 %v676, %v679
      %vm681 = vweird.f32 %v510
      %vm682 = vweird.f32 %v676
      %vm683 = vmor %vm681, %vm682
      %v684 = vsel %vm683, %v676, %v680
      %v685 = vand.u32 2147483647, %v510
      %vm686 = vcmp.eq.f32.partialorder %v685, 8.507059e+37
      %v687 = vand.u32 %v510, 2147483648
      %v688 = vor.u32 1.1754944e-38, %v687
      %v689 = vsel %vm686, %v688, %v684
      %v690 = vmul.f32 %v467, %v689
      %v691 = vrcp.pop %v513
      %v692 = vmul.f32 %v513, %v691
      %v693 = vsub.f32 1.0, %v692
      %v694 = vmul.f32 %v691, %v693
      %v695 = vadd.f32 %v691, %v694
      %vm696 = vweird.f32 %v513
      %vm697 = vweird.f32 %v691
      %vm698 = vmor %vm696, %vm697
      %v699 = vsel %vm698, %v691, %v695
      %v700 = vand.u32 2147483647, %v513
      %vm701 = vcmp.eq.f32.partialorder %v700, 8.507059e+37
      %v702 = vand.u32 %v513, 2147483648
      %v703 = vor.u32 1.1754944e-38, %v702
      %v704 = vsel %vm701, %v703, %v699
      %v705 = vmul.f32 %v469, %v704
      %v706 = vrcp.pop %v516
      %v707 = vmul.f32 %v516, %v706
      %v708 = vsub.f32 1.0, %v707
      %v709 = vmul.f32 %v706, %v708
      %v710 = vadd.f32 %v706, %v709
      %vm711 = vweird.f32 %v516
      %vm712 = vweird.f32 %v706
      %vm713 = vmor %vm711, %vm712
      %v714 = vsel %vm713, %v706, %v710
      %v715 = vand.u32 2147483647, %v516
      %vm716 = vcmp.eq.f32.partialorder %v715, 8.507059e+37
      %v717 = vand.u32 %v516, 2147483648
      %v718 = vor.u32 1.1754944e-38, %v717
      %v719 = vsel %vm716, %v718, %v714
      %v720 = vmul.f32 %v471, %v719
      %v721 = vrcp.pop %v519
      %v722 = vmul.f32 %v519, %v721
      %v723 = vsub.f32 1.0, %v722
      %v724 = vmul.f32 %v721, %v723
      %v725 = vadd.f32 %v721, %v724
      %vm726 = vweird.f32 %v519
      %vm727 = vweird.f32 %v721
      %vm728 = vmor %vm726, %vm727
      %v729 = vsel %vm728, %v721, %v725
      %v730 = vand.u32 2147483647, %v519
      %vm731 = vcmp.eq.f32.partialorder %v730, 8.507059e+37
      %v732 = vand.u32 %v519, 2147483648
      %v733 = vor.u32 1.1754944e-38, %v732
      %v734 = vsel %vm731, %v733, %v729
      %v735 = vmul.f32 %v473, %v734
      %v736 = vrcp.pop %v522
      %v737 = vmul.f32 %v522, %v736
      %v738 = vsub.f32 1.0, %v737
      %v739 = vmul.f32 %v736, %v738
      %v740 = vadd.f32 %v736, %v739
      %vm741 = vweird.f32 %v522
      %vm742 = vweird.f32 %v736
      %vm743 = vmor %vm741, %vm742
      %v744 = vsel %vm743, %v736, %v740
      %v745 = vand.u32 2147483647, %v522
      %vm746 = vcmp.eq.f32.partialorder %v745, 8.507059e+37
      %v747 = vand.u32 %v522, 2147483648
      %v748 = vor.u32 1.1754944e-38, %v747
      %v749 = vsel %vm746, %v748, %v744
      %v750 = vmul.f32 %v475, %v749
      %v751 = vrcp.pop %v525
      %v752 = vmul.f32 %v525, %v751
      %v753 = vsub.f32 1.0, %v752
      %v754 = vmul.f32 %v751, %v753
      %v755 = vadd.f32 %v751, %v754
      %vm756 = vweird.f32 %v525
      %vm757 = vweird.f32 %v751
      %vm758 = vmor %vm756, %vm757
      %v759 = vsel %vm758, %v751, %v755
      %v760 = vand.u32 2147483647, %v525
      %vm761 = vcmp.eq.f32.partialorder %v760, 8.507059e+37
      %v762 = vand.u32 %v525, 2147483648
      %v763 = vor.u32 1.1754944e-38, %v762
      %v764 = vsel %vm761, %v763, %v759
      %v765 = vmul.f32 %v477, %v764
      %766 = vst.msk [vmem:[%s207] sm:$0xff] %vm292, %v327
      %767 = vst.msk [vmem:[%s207 + $0x8] sm:$0xff] %vm292, %v329
      %768 = vst.msk [vmem:[%s207 + $0x10] sm:$0xff] %vm292, %v332
      %769 = vst.msk [vmem:[%s207 + $0x18] sm:$0xff] %vm292, %v334
      %770 = vst.msk [vmem:[%s207 + $0x20] sm:$0xff] %vm292, %v337
      %771 = vst.msk [vmem:[%s207 + $0x28] sm:$0xff] %vm292, %v339
      %772 = vst.msk [vmem:[%s207 + $0x30] sm:$0xff] %vm292, %v342
      %773 = vst.msk [vmem:[%s207 + $0x38] sm:$0xff] %vm292, %v344
      %774 = vst.msk [vmem:[%s207 + $0x40] sm:$0xff] %vm292, %v347
      %775 = vst.msk [vmem:[%s207 + $0x48] sm:$0xff] %vm292, %v349
      %776 = vst.msk [vmem:[%s207 + $0x50] sm:$0xff] %vm292, %v352
      %777 = vst.msk [vmem:[%s207 + $0x58] sm:$0xff] %vm292, %v354
      %778 = vst.msk [vmem:[%s207 + $0x60] sm:$0xff] %vm292, %v357
      %779 = vst.msk [vmem:[%s207 + $0x68] sm:$0xff] %vm292, %v359
      %780 = vst.msk [vmem:[%s207 + $0x70] sm:$0xff] %vm292, %v362
      %781 = vst.msk [vmem:[%s207 + $0x78] sm:$0xff] %vm292, %v364
      %v782 = vpack.c.bf16 %v540, %v540
      %v783 = vpack.c.bf16 %v555, %v555
      %v784 = vpack.c.bf16 %v570, %v570
      %v785 = vpack.c.bf16 %v585, %v585
      %v786 = vpack.c.bf16 %v600, %v600
      %v787 = vpack.c.bf16 %v615, %v615
      %v788 = vpack.c.bf16 %v630, %v630
      %v789 = vpack.c.bf16 %v645, %v645
      %v790 = vpack.c.bf16 %v660, %v660
      %v791 = vpack.c.bf16 %v675, %v675
      %v792 = vpack.c.bf16 %v690, %v690
      %v793 = vpack.c.bf16 %v705, %v705
      %v794 = vpack.c.bf16 %v720, %v720
      %v795 = vpack.c.bf16 %v735, %v735
      %v796 = vpack.c.bf16 %v750, %v750
      %v797 = vpack.c.bf16 %v765, %v765
      %vm798 = vcmask 257024
      %799 = vst.msk [vmem:[%s213] sm:$0xf] %vm798, %v782
      %800 = vst.msk [vmem:[%s213 + $0x4] sm:$0xf] %vm798, %v783
      %801 = vst.msk [vmem:[%s213 + $0x8] sm:$0xf] %vm798, %v784
      %802 = vst.msk [vmem:[%s213 + $0xc] sm:$0xf] %vm798, %v785
      %803 = vst.msk [vmem:[%s213 + $0x10] sm:$0xf] %vm798, %v786
      %804 = vst.msk [vmem:[%s213 + $0x14] sm:$0xf] %vm798, %v787
      %805 = vst.msk [vmem:[%s213 + $0x18] sm:$0xf] %vm798, %v788
      %806 = vst.msk [vmem:[%s213 + $0x1c] sm:$0xf] %vm798, %v789
      %807 = vst.msk [vmem:[%s213 + $0x20] sm:$0xf] %vm798, %v790
      %808 = vst.msk [vmem:[%s213 + $0x24] sm:$0xf] %vm798, %v791
      %809 = vst.msk [vmem:[%s213 + $0x28] sm:$0xf] %vm798, %v792
      %810 = vst.msk [vmem:[%s213 + $0x2c] sm:$0xf] %vm798, %v793
      %811 = vst.msk [vmem:[%s213 + $0x30] sm:$0xf] %vm798, %v794
      %812 = vst.msk [vmem:[%s213 + $0x34] sm:$0xf] %vm798, %v795
      %813 = vst.msk [vmem:[%s213 + $0x38] sm:$0xf] %vm798, %v796
      %814 = vst.msk [vmem:[%s213 + $0x3c] sm:$0xf] %vm798, %v797
      %s815 = smul.u32 16, %s16
      %p816 = scmp.lt.s32.totalorder %s815, 63
      %s817 = scalar_select %p816, %s815, 63
      %s818 = smul.addr %s817, 8
      %s819 = scalar_lea.vmem %s3, %s818
      %s820 = smul.u32 16, %s16
      %p821 = scmp.lt.s32.totalorder %s820, 63
      %s822 = scalar_select %p821, %s820, 63
      %s823 = smul.addr %s822, 4
      %s824 = scalar_lea.vmem %s4, %s823
      // Predicated region
      $region33: #{tpu_custom_call.1} parent=31 // pred_check
        %p825 = pneg %p102
      $region34: #{tpu_custom_call.1} parent=31 // pred_check_branch
        %827 = sbr.rel (%p825) target = $region36
      $region35: #{tpu_custom_call.1} parent=31 // pred_region
        %s828 = smul.u32 16, %s16
      $region36: #{tpu_custom_call.1} parent=31 // pred_fallthru
        _
      // Predicated region
      $region37: #{tpu_custom_call.1} parent=31 // pred_check
        %p829 = pneg %p128
      $region38: #{tpu_custom_call.1} parent=31 // pred_check_branch
        %831 = sbr.rel (%p829) target = $region40
      $region39: #{tpu_custom_call.1} parent=31 // pred_region
        %s832 = smul.u32 16, %s16
      $region40: #{tpu_custom_call.1} parent=31 // pred_fallthru
        _
    $region32: #{tpu_custom_call.1} parent=5 // pred_fallthru
      _
    %p833 = scmp.le.s32.totalorder 2, %s11
    // Predicated region
    $region41: #{tpu_custom_call.1} parent=5 // pred_check
      %p834 = pneg %p833
    $region42: #{tpu_custom_call.1} parent=5 // pred_check_branch
      %836 = sbr.rel (%p834) target = $region44
    $region43: #{tpu_custom_call.1} parent=5 // pred_region
      %s837 = ssub.s32 %s11, 2
      // Predicated region
      $region45: #{tpu_custom_call.1} parent=43 // pred_check
        %p838 = pneg %p108
      $region46: #{tpu_custom_call.1} parent=43 // pred_check_branch
        %840 = sbr.rel (%p838) target = $region48
      $region47: #{tpu_custom_call.1} parent=43 // pred_region
        %s841 = smul.u32 16, %s17
        %p842 = scmp.lt.s32.totalorder %s841, 63
        %s843 = scalar_select %p842, %s841, 63
        %s844 = smul.addr %s843, 8
        %s845 = scalar_lea.vmem %s3, %s844
      $region48: #{tpu_custom_call.1} parent=43 // pred_fallthru
        _
      // Predicated region
      $region49: #{tpu_custom_call.1} parent=43 // pred_check
        %p846 = pneg %p134
      $region50: #{tpu_custom_call.1} parent=43 // pred_check_branch
        %848 = sbr.rel (%p846) target = $region52
      $region51: #{tpu_custom_call.1} parent=43 // pred_region
        %s849 = smul.u32 16, %s17
        %p850 = scmp.lt.s32.totalorder %s849, 63
        %s851 = scalar_select %p850, %s849, 63
        %s852 = smul.addr %s851, 4
        %s853 = scalar_lea.vmem %s4, %s852
      $region52: #{tpu_custom_call.1} parent=43 // pred_fallthru
        _
    $region44: #{tpu_custom_call.1} parent=5 // pred_fallthru
      _
  $region6: #{tpu_custom_call.1} parent=0 // loop_footer
    %s15 = sadd.s32 1, %s11
  $region7: #{tpu_custom_call.1} parent=0 // loop_footer_branch
    %10 = sbr.rel target = $region3
  $region8: #{tpu_custom_call.1} parent=0 // loop_exit
    _

</llo_original>
